<compile_context>
chip_gen: v6e
topology: v6e:2x2x1
jax: 0.10.0
libtpu: 0.0.40
codegen_flags: <defaults>
</compile_context>

<pallas_src>
import functools

import jax
import jax.numpy as jnp
from jax import lax
from jax.experimental import pallas as pl
from jax.experimental.pallas import tpu as pltpu

CLASS_WEIGHT = (0.51, 32.9)   # hard-coded in the PyTorch module
IGNORE_INDEX = 255

_LANE = 128
_SUBLANE = 8
_MAX_PIX_PER_STEP = 1 << 17   # ~131072 px/step -> ~4.5 MiB double-buffered VMEM


def _wce2_kernel(logits_ref, tgt_ref, num_ref, den_ref, acc_num, acc_den,
                 *, h, w, w0, w1, ignore_index, ragged_h, ragged_w):
    hb = pl.program_id(1)
    wb = pl.program_id(2)

    @pl.when(wb == 0)
    def _():
        acc_num[...] = jnp.zeros_like(acc_num)
        acc_den[...] = jnp.zeros_like(acc_den)

    x0 = logits_ref[0, 0].astype(jnp.float32)        # (TH, TW) class-0 logits
    x1 = logits_ref[0, 1].astype(jnp.float32)        # (TH, TW) class-1 logits
    t = tgt_ref[0]                                   # (TH, TW) int targets
    th, tw = x0.shape

    # 2-class cross entropy, closed form:
    #   ce = lse - x_target = softplus(x_other - x_target)   (numerically stable)
    is1 = t == 1
    z = jnp.where(is1, x0 - x1, x1 - x0)
    ce = jnp.maximum(z, 0.0) + jnp.log1p(jnp.exp(-jnp.abs(z)))
    w_t = jnp.where(is1, jnp.float32(w1), jnp.float32(w0))

    # ignore-index mask; positional masks only exist when tiles are ragged
    # (static trace-time decision -> zero cost in the common aligned case).
    valid = t != ignore_index
    if ragged_h:
        rows = hb * th + lax.broadcasted_iota(jnp.int32, (th, tw), 0)
        valid = valid & (rows < h)
    if ragged_w:
        cols = wb * tw + lax.broadcasted_iota(jnp.int32, (th, tw), 1)
        valid = valid & (cols < w)

    # keep these as selects (not multiply-by-mask) so padded-tail garbage
    # (NaN/Inf) never propagates into the accumulators.
    acc_num[...] += jnp.where(valid, w_t * ce, 0.0)
    acc_den[...] += jnp.where(valid, w_t, 0.0)

    @pl.when(wb == pl.num_programs(2) - 1)
    def _():
        num_ref[...] = jnp.full(num_ref.shape, jnp.sum(acc_num[...]), jnp.float32)
        den_ref[...] = jnp.full(den_ref.shape, jnp.sum(acc_den[...]), jnp.float32)


def _pick_tiles(h, w):
    """Dense (TH, TW) tile: TW lane-aligned (or full W), TH multiple of 8."""
    if w % _LANE == 0:
        tw = min(w, 2048)
    else:
        tw = w                       # full extent (allowed when not 128-aligned)
    th = max(_SUBLANE, (_MAX_PIX_PER_STEP // tw) // _SUBLANE * _SUBLANE)
    if th >= h:
        th = h                       # full extent
    return th, tw


def weight_cross_entropy_loss_2d(output, target, weight=CLASS_WEIGHT,
                                 ignore_index=IGNORE_INDEX):
    """output: (N, C, H, W) float logits; target: (N, H, W) int class indices."""
    n, c, h, w = output.shape

    if c == 1:
        # TODO(synk): BCEWithLogitsLoss branch (single-channel output) kept in
        # plain JAX; mirrors the torch module's quirks (the (2,)-element weight
        # only broadcasts when W==2, no ignore_index, unweighted mean).
        x = output[:, 0]
        t = target.astype(jnp.float32)
        w_arr = jnp.asarray(weight, dtype=jnp.float32)
        per = w_arr * (jnp.maximum(x, 0.0) - x * t +
                       jnp.log1p(jnp.exp(-jnp.abs(x))))
        return jnp.mean(per)

    assert c == 2, "module's hard-coded weight [0.51, 32.9] implies 2 classes"
    w0, w1 = float(weight[0]), float(weight[1])

    # targets pass through in their native integer dtype (no extra HBM pass).
    if not jnp.issubdtype(target.dtype, jnp.integer):
        target = target.astype(jnp.int32)

    th, tw = _pick_tiles(h, w)
    n_hb = pl.cdiv(h, th)
    n_wb = pl.cdiv(w, tw)

    kernel = functools.partial(
        _wce2_kernel, h=h, w=w, w0=w0, w1=w1, ignore_index=ignore_index,
        ragged_h=(h % th != 0), ragged_w=(w % tw != 0))

    num_p, den_p = pl.pallas_call(
        kernel,
        out_shape=(jax.ShapeDtypeStruct((n, n_hb, _SUBLANE, _LANE), jnp.float32),
                   jax.ShapeDtypeStruct((n, n_hb, _SUBLANE, _LANE), jnp.float32)),
        grid_spec=pltpu.PrefetchScalarGridSpec(
            num_scalar_prefetch=0,
            grid=(n, n_hb, n_wb),
            in_specs=[
                pl.BlockSpec((1, c, th, tw), lambda i, r, q: (i, 0, r, q)),
                pl.BlockSpec((1, th, tw), lambda i, r, q: (i, r, q)),
            ],
            out_specs=[
                pl.BlockSpec((1, 1, _SUBLANE, _LANE), lambda i, r, q: (i, r, 0, 0)),
                pl.BlockSpec((1, 1, _SUBLANE, _LANE), lambda i, r, q: (i, r, 0, 0)),
            ],
            scratch_shapes=[pltpu.VMEM((th, tw), jnp.float32),
                            pltpu.VMEM((th, tw), jnp.float32)],
        ),
        compiler_params=pltpu.CompilerParams(
            dimension_semantics=("parallel", "parallel", "arbitrary")),
    )(output, target)

    num = jnp.sum(num_p[:, :, 0, 0])
    den = jnp.sum(den_p[:, :, 0, 0])
    # den == 0 (all pixels ignored) -> NaN, matching torch's weighted mean.
    return num / den


def _reference(output, target, weight=CLASS_WEIGHT, ignore_index=IGNORE_INDEX):
    n, c, h, w = output.shape
    logits = jnp.transpose(output, (0, 2, 3, 1)).reshape(-1, c).astype(jnp.float32)
    tgt = target.reshape(-1)
    w_arr = jnp.asarray(weight, dtype=jnp.float32)
    lse = jax.scipy.special.logsumexp(logits, axis=-1)
    tgt_safe = jnp.where(tgt == ignore_index, 0, tgt)
    tgt_logit = jnp.take_along_axis(logits, tgt_safe[:, None], axis=-1)[:, 0]
    valid = tgt != ignore_index
    ce = lse - tgt_logit
    w_t = w_arr[tgt_safe]
    num = jnp.sum(jnp.where(valid, w_t * ce, 0.0))
    den = jnp.sum(jnp.where(valid, w_t, 0.0))
    return num / den


if __name__ == "__main__":
    key = jax.random.PRNGKey(0)
    k1, k2, k3 = jax.random.split(key, 3)

    N, C, H, W = 2, 2, 16, 16   # 2 classes, matching the module's weight tensor
    logits = jax.random.normal(k1, (N, C, H, W), dtype=jnp.float32)
    target = jax.random.randint(k2, (N, H, W), 0, C, dtype=jnp.int32)
    ignore_mask = jax.random.uniform(k3, (N, H, W)) < 0.1
    target = jnp.where(ignore_mask, IGNORE_INDEX, target)

    loss = weight_cross_entropy_loss_2d(logits, target)
    jax.block_until_ready(loss)

    ref = _reference(logits, target)
    assert jnp.allclose(loss, ref, rtol=2e-5, atol=1e-5), (loss, ref)

    print("KERNEL_OK")
</pallas_src>

<mosaic_0001>
module attributes {stable_mosaic.version = 11 : i64} {
  func.func @_wce2_kernel(%arg0: i32, %arg1: i32, %arg2: i32, %arg3: memref<1x2x16x16xf32, #tpu.memory_space<vmem>>, %arg4: memref<1x16x16xi32, #tpu.memory_space<vmem>>, %arg5: memref<1x1x8x128xf32, #tpu.memory_space<vmem>>, %arg6: memref<1x1x8x128xf32, #tpu.memory_space<vmem>>, %arg7: memref<16x16xf32, #tpu.memory_space<vmem>>, %arg8: memref<16x16xf32, #tpu.memory_space<vmem>>) attributes {dimension_semantics = [#tpu.dimension_semantics<parallel>, #tpu.dimension_semantics<parallel>, #tpu.dimension_semantics<arbitrary>], iteration_bounds = array<i64: 2, 1, 1>, scalar_prefetch = 0 : i64, scratch_operands = 2 : i64, tpu.core_type = #tpu.core_type<tc>, window_params = [{transform_indices = @transform_0, window_bounds = array<i64: 1, 2, 16, 16>}, {transform_indices = @transform_1, window_bounds = array<i64: 1, 16, 16>}, {transform_indices = @transform_2, window_bounds = array<i64: 1, 1, 8, 128>}, {transform_indices = @transform_3, window_bounds = array<i64: 1, 1, 8, 128>}]} {
    %c0_i32 = arith.constant 0 : i32
    %0 = arith.cmpi eq, %arg2, %c0_i32 : i32
    %1 = arith.extui %0 : i1 to i32
    %c0_i32_0 = arith.constant 0 : i32
    %2 = arith.cmpi ne, %1, %c0_i32_0 : i32
    scf.if %2 {
      %cst_25 = arith.constant 0.000000e+00 : f32
      %41 = vector.broadcast %cst_25 : f32 to vector<16x16xf32>
      %c0_26 = arith.constant 0 : index
      %c0_27 = arith.constant 0 : index
      %42 = vector.load %arg7[%c0_26, %c0_27] : memref<16x16xf32, #tpu.memory_space<vmem>>, vector<16x16xf32>
      tpu.vector_store %arg7[%c0_26, %c0_27], %41 {strides = array<i32>} : memref<16x16xf32, #tpu.memory_space<vmem>>, vector<16x16xf32>,
      %cst_28 = arith.constant 0.000000e+00 : f32
      %43 = vector.broadcast %cst_28 : f32 to vector<16x16xf32>
      %c0_29 = arith.constant 0 : index
      %c0_30 = arith.constant 0 : index
      %44 = vector.load %arg8[%c0_29, %c0_30] : memref<16x16xf32, #tpu.memory_space<vmem>>, vector<16x16xf32>
      tpu.vector_store %arg8[%c0_29, %c0_30], %43 {strides = array<i32>} : memref<16x16xf32, #tpu.memory_space<vmem>>, vector<16x16xf32>,
    } else {
    }
    %c0 = arith.constant 0 : index
    %c0_1 = arith.constant 0 : index
    %c0_2 = arith.constant 0 : index
    %c0_3 = arith.constant 0 : index
    %3 = vector.load %arg3[%c0, %c0_1, %c0_2, %c0_3] : memref<1x2x16x16xf32, #tpu.memory_space<vmem>>, vector<1x1x16x16xf32>
    %4 = vector.shape_cast %3 : vector<1x1x16x16xf32> to vector<16x16xf32>
    %c0_4 = arith.constant 0 : index
    %c1 = arith.constant 1 : index
    %c0_5 = arith.constant 0 : index
    %c0_6 = arith.constant 0 : index
    %5 = vector.load %arg3[%c0_4, %c1, %c0_5, %c0_6] : memref<1x2x16x16xf32, #tpu.memory_space<vmem>>, vector<1x1x16x16xf32>
    %6 = vector.shape_cast %5 : vector<1x1x16x16xf32> to vector<16x16xf32>
    %c0_7 = arith.constant 0 : index
    %c0_8 = arith.constant 0 : index
    %c0_9 = arith.constant 0 : index
    %7 = vector.load %arg4[%c0_7, %c0_8, %c0_9] : memref<1x16x16xi32, #tpu.memory_space<vmem>>, vector<1x16x16xi32>
    %8 = vector.shape_cast %7 : vector<1x16x16xi32> to vector<16x16xi32>
    %c1_i32 = arith.constant 1 : i32
    %9 = vector.broadcast %c1_i32 : i32 to vector<16x16xi32>
    %10 = arith.cmpi eq, %8, %9 : vector<16x16xi32>
    %11 = arith.subf %4, %6 : vector<16x16xf32>
    %12 = arith.subf %6, %4 : vector<16x16xf32>
    %13 = arith.select %10, %11, %12 : vector<16x16xi1>, vector<16x16xf32>
    %cst = arith.constant 0.000000e+00 : f32
    %14 = vector.broadcast %cst : f32 to vector<16x16xf32>
    %15 = arith.maximumf %13, %14 : vector<16x16xf32>
    %16 = math.absf %13 : vector<16x16xf32>
    %cst_10 = arith.constant 0.000000e+00 : f32
    %17 = vector.broadcast %cst_10 : f32 to vector<16x16xf32>
    %18 = arith.subf %17, %16 : vector<16x16xf32>
    %19 = math.exp %18 : vector<16x16xf32>
    %20 = math.log1p %19 : vector<16x16xf32>
    %21 = arith.addf %15, %20 : vector<16x16xf32>
    %cst_11 = arith.constant 3.290000e+01 : f32
    %cst_12 = arith.constant 5.100000e-01 : f32
    %22 = vector.broadcast %cst_11 : f32 to vector<16x16xf32>
    %23 = vector.broadcast %cst_12 : f32 to vector<16x16xf32>
    %24 = arith.select %10, %22, %23 : vector<16x16xi1>, vector<16x16xf32>
    %c255_i32 = arith.constant 255 : i32
    %25 = vector.broadcast %c255_i32 : i32 to vector<16x16xi32>
    %26 = arith.cmpi ne, %8, %25 : vector<16x16xi32>
    %c0_13 = arith.constant 0 : index
    %c0_14 = arith.constant 0 : index
    %27 = vector.load %arg7[%c0_13, %c0_14] : memref<16x16xf32, #tpu.memory_space<vmem>>, vector<16x16xf32>
    %28 = arith.mulf %24, %21 : vector<16x16xf32>
    %cst_15 = arith.constant 0.000000e+00 : f32
    %29 = vector.broadcast %cst_15 : f32 to vector<16x16xf32>
    %30 = arith.select %26, %28, %29 : vector<16x16xi1>, vector<16x16xf32>
    %31 = arith.addf %27, %30 : vector<16x16xf32>
    %c0_16 = arith.constant 0 : index
    %c0_17 = arith.constant 0 : index
    %32 = vector.load %arg7[%c0_16, %c0_17] : memref<16x16xf32, #tpu.memory_space<vmem>>, vector<16x16xf32>
    tpu.vector_store %arg7[%c0_16, %c0_17], %31 {strides = array<i32>} : memref<16x16xf32, #tpu.memory_space<vmem>>, vector<16x16xf32>,
    %c0_18 = arith.constant 0 : index
    %c0_19 = arith.constant 0 : index
    %33 = vector.load %arg8[%c0_18, %c0_19] : memref<16x16xf32, #tpu.memory_space<vmem>>, vector<16x16xf32>
    %cst_20 = arith.constant 0.000000e+00 : f32
    %34 = vector.broadcast %cst_20 : f32 to vector<16x16xf32>
    %35 = arith.select %26, %24, %34 : vector<16x16xi1>, vector<16x16xf32>
    %36 = arith.addf %33, %35 : vector<16x16xf32>
    %c0_21 = arith.constant 0 : index
    %c0_22 = arith.constant 0 : index
    %37 = vector.load %arg8[%c0_21, %c0_22] : memref<16x16xf32, #tpu.memory_space<vmem>>, vector<16x16xf32>
    tpu.vector_store %arg8[%c0_21, %c0_22], %36 {strides = array<i32>} : memref<16x16xf32, #tpu.memory_space<vmem>>, vector<16x16xf32>,
    %c0_i32_23 = arith.constant 0 : i32
    %38 = arith.cmpi eq, %arg2, %c0_i32_23 : i32
    %39 = arith.extui %38 : i1 to i32
    %c0_i32_24 = arith.constant 0 : i32
    %40 = arith.cmpi ne, %39, %c0_i32_24 : i32
    scf.if %40 {
      %c0_25 = arith.constant 0 : index
      %c0_26 = arith.constant 0 : index
      %41 = vector.load %arg7[%c0_25, %c0_26] : memref<16x16xf32, #tpu.memory_space<vmem>>, vector<16x16xf32>
      %42 = vector.shape_cast %41 : vector<16x16xf32> to vector<1x16x16xf32>
      %cst_27 = arith.constant dense<0.000000e+00> : vector<1xf32>
      %43 = vector.multi_reduction <add>, %42, %cst_27 [1, 2] : vector<1x16x16xf32> to vector<1xf32>
      %44 = vector.shape_cast %43 : vector<1xf32> to vector<1x1x1xf32>
      %45 = vector.extract %44[0, 0, 0] : f32 from vector<1x1x1xf32>
      %46 = vector.broadcast %45 : f32 to vector<1x1x8x128xf32>
      %c0_28 = arith.constant 0 : index
      %c0_29 = arith.constant 0 : index
      %c0_30 = arith.constant 0 : index
      %c0_31 = arith.constant 0 : index
      %47 = vector.load %arg5[%c0_28, %c0_29, %c0_30, %c0_31] : memref<1x1x8x128xf32, #tpu.memory_space<vmem>>, vector<1x1x8x128xf32>
      tpu.vector_store %arg5[%c0_28, %c0_29, %c0_30, %c0_31], %46 {strides = array<i32>} : memref<1x1x8x128xf32, #tpu.memory_space<vmem>>, vector<1x1x8x128xf32>,
      %c0_32 = arith.constant 0 : index
      %c0_33 = arith.constant 0 : index
      %48 = vector.load %arg8[%c0_32, %c0_33] : memref<16x16xf32, #tpu.memory_space<vmem>>, vector<16x16xf32>
      %49 = vector.shape_cast %48 : vector<16x16xf32> to vector<1x16x16xf32>
      %cst_34 = arith.constant dense<0.000000e+00> : vector<1xf32>
      %50 = vector.multi_reduction <add>, %49, %cst_34 [1, 2] : vector<1x16x16xf32> to vector<1xf32>
      %51 = vector.shape_cast %50 : vector<1xf32> to vector<1x1x1xf32>
      %52 = vector.extract %51[0, 0, 0] : f32 from vector<1x1x1xf32>
      %53 = vector.broadcast %52 : f32 to vector<1x1x8x128xf32>
      %c0_35 = arith.constant 0 : index
      %c0_36 = arith.constant 0 : index
      %c0_37 = arith.constant 0 : index
      %c0_38 = arith.constant 0 : index
      %54 = vector.load %arg6[%c0_35, %c0_36, %c0_37, %c0_38] : memref<1x1x8x128xf32, #tpu.memory_space<vmem>>, vector<1x1x8x128xf32>
      tpu.vector_store %arg6[%c0_35, %c0_36, %c0_37, %c0_38], %53 {strides = array<i32>} : memref<1x1x8x128xf32, #tpu.memory_space<vmem>>, vector<1x1x8x128xf32>,
    } else {
    }
    return
  }
  func.func @transform_0(%arg0: i32, %arg1: i32, %arg2: i32) -> (i32, i32, i32, i32) {
    %c0_i32 = arith.constant 0 : i32
    %c0_i32_0 = arith.constant 0 : i32
    return %arg0, %c0_i32, %arg1, %arg2 : i32, i32, i32, i32
  }
  func.func @transform_1(%arg0: i32, %arg1: i32, %arg2: i32) -> (i32, i32, i32) {
    %c0_i32 = arith.constant 0 : i32
    return %arg0, %arg1, %arg2 : i32, i32, i32
  }
  func.func @transform_2(%arg0: i32, %arg1: i32, %arg2: i32) -> (i32, i32, i32, i32) {
    %c0_i32 = arith.constant 0 : i32
    %c0_i32_0 = arith.constant 0 : i32
    %c0_i32_1 = arith.constant 0 : i32
    return %arg0, %arg1, %c0_i32, %c0_i32_0 : i32, i32, i32, i32
  }
  func.func @transform_3(%arg0: i32, %arg1: i32, %arg2: i32) -> (i32, i32, i32, i32) {
    %c0_i32 = arith.constant 0 : i32
    %c0_i32_0 = arith.constant 0 : i32
    %c0_i32_1 = arith.constant 0 : i32
    return %arg0, %arg1, %c0_i32, %c0_i32_0 : i32, i32, i32, i32
  }
}

</mosaic_0001>

<llo_original>
// kernel: tpu_custom_call.1
$region0: #{tpu_custom_call.1}
  #allocation0 [shape = 'u32[]', space=smem, size = 0x4, offset = 0x4, fixed_abs, tag = 'smem constant byte address 0x4 - core index']
  #allocation1 [shape = 'u32[144,128]{1,0:T(1,128)}', space=vmem, size = 0x12000, scoped, tag = 'internal scratch']
  #allocation2 [shape = 'f32[16,16]{1,0:T(8,128)}', space=vmem, size = 0x2000, scoped, tag = 'scratch operand']
  #allocation3 [shape = 'f32[16,16]{1,0:T(8,128)}', space=vmem, size = 0x2000, scoped, tag = 'scratch operand']
  %s0 = inlined_call_operand.hbm [shape: f32[2,2,16,16], index: 0, kind: input, shape index: {}]
  %s1 = inlined_call_operand.hbm [shape: s32[2,16,16], index: 1, kind: input, shape index: {}]
  %s2 = inlined_call_operand.hbm [shape: f32[2,1,8,128], index: 2, kind: output, shape index: {0}]
  %s3 = inlined_call_operand.hbm [shape: f32[2,1,8,128], index: 3, kind: output, shape index: {1}]
  %4 = xla_tuple %s2, %s3
  %s5 = sld [smem:[#allocation0]]
  $region65: #{tpu_custom_call.1} parent=0
    _
  %s7 = ssub.s32 1, %s5
  %s8 = scalar_select 0, %s7, %s5
  $region1: #{tpu_custom_call.1} parent=0
    #allocation4 [shape = 'u8[32768]{0}', space=vmem, size = 0x8000, scoped, tag = 'input window, operand 0']
    #allocation5 [shape = 's32[2]{0}', space=sflag, size = 0x8, scoped, tag = 'scoped memory for tpu_custom_call.1']
    #allocation6 [shape = 's32[2]{0}', space=sflag, size = 0x8, scoped, tag = 'scoped memory for tpu_custom_call.1']
    #allocation7 [shape = 'u8[16384]{0}', space=vmem, size = 0x4000, scoped, tag = 'input window, operand 1']
    #allocation8 [shape = 's32[2]{0}', space=sflag, size = 0x8, scoped, tag = 'scoped memory for tpu_custom_call.1']
    #allocation9 [shape = 'u8[8192]{0}', space=vmem, size = 0x2000, scoped, tag = 'output window, operand 0']
    #allocation10 [shape = 'u8[8192]{0}', space=vmem, size = 0x2000, scoped, tag = 'output window, operand 1']
    #allocation11 [shape = 's32[2]{0}', space=sflag, size = 0x8, scoped, tag = 'scoped memory for tpu_custom_call.1']
    %9 = vsyncpa [#allocation5], 0
    %s10 = scalar_lea.sflag [#allocation5], 1
    %11 = vsyncpa %s10, 0
    %12 = vsyncpa [#allocation8], 0
    %s13 = scalar_lea.sflag [#allocation8], 1
    %14 = vsyncpa %s13, 0
    %15 = vsyncpa [#allocation6], 0
    %s16 = scalar_lea.sflag [#allocation6], 1
    %17 = vsyncpa %s16, 0
    %18 = vsyncpa [#allocation11], 0
    %s19 = scalar_lea.sflag [#allocation11], 1
    %20 = vsyncpa %s19, 0
    loop: start=0, step=1, limit=4
    $region2: #{tpu_custom_call.1} parent=1 // loop_pre_header
      _
    $region3: #{tpu_custom_call.1} parent=1 // loop_header
      %s22 = sphi 0, %s26
      %p23 = scmp.ge.s32.totalorder %s22, 4
      %s29 = sphi 0, %s48
      %s30 = sphi 0, %s44
      %s31 = sphi 0, %s40
      %s32 = sphi 0, %s29
      %s33 = sphi 0, %s30
      %s34 = sphi 0, %s31
      %s35 = sphi 0, %s32
      %s36 = sphi 0, %s33
      %s37 = sphi 0, %s34
      %s55 = sphi 0, %s57
      %s58 = sphi 0, %s55
      %s59 = sphi 0, %s58
      %s75 = sphi 0, %s59
      %s85 = sphi 0, %s87
      %s88 = sphi 0, %s85
      %s89 = sphi 0, %s88
      %s105 = sphi 0, %s89
      %s113 = sphi 0, %s115
      %s116 = sphi 0, %s113
      %s117 = sphi 0, %s116
      %s133 = sphi 0, %s117
      %s141 = sphi 0, %s143
      %s144 = sphi 0, %s141
      %s145 = sphi 0, %s144
      %s161 = sphi 0, %s145
    $region4: #{tpu_custom_call.1} parent=1 // loop_header_branch
      %25 = sbr.rel (%p23) target = $region8
    $region5: #{tpu_custom_call.1} parent=1 // loop_body
      %s27 = ssub.s32 %s22, 1
      %s28 = ssub.s32 %s22, 2
      %s38 = sadd.s32 1, %s31
      %p39 = scmp.ge.s32.totalorder %s38, 1
      %s40 = scalar_select %p39, 0, %s38
      %s41 = sadd.s32 1, %s30
      %s42 = scalar_select %p39, %s41, %s30
      %p43 = scmp.ge.s32.totalorder %s42, 1
      %s44 = scalar_select %p43, 0, %s42
      %s45 = sadd.s32 1, %s29
      %s46 = scalar_select %p43, %s45, %s29
      %p47 = scmp.ge.s32.totalorder %s46, 2
      %s48 = scalar_select %p47, 0, %s46
      %s49 = ssub.s32 %s29, %s48
      %s50 = ssub.s32 %s30, %s44
      %s51 = sor.u32 %s49, %s50
      %s52 = ssub.s32 %s31, %s40
      %s53 = sor.u32 %s51, %s52
      %p54 = scmp.eq.s32.totalorder %s53, 0
      %s56 = sadd.s32 %s55, 1
      %s57 = scalar_select %p54, %s55, %s56
      %p60 = pneg %p54
      %p61 = scmp.eq.s32.totalorder %s22, 1
      %p62 = por %p60, %p61
      %p63 = scmp.ne.s32.totalorder %s55, %s58
      %p64 = scmp.eq.s32.totalorder %s22, 0
      %p65 = por %p63, %p64
      %p66 = scmp.ne.s32.totalorder %s55, %s58
      %p67 = scmp.eq.s32.totalorder %s27, 1
      %p68 = por %p66, %p67
      %p69 = scmp.ne.s32.totalorder %s58, %s59
      %p70 = scmp.eq.s32.totalorder %s27, 0
      %p71 = por %p69, %p70
      %p72 = scmp.ne.s32.totalorder %s58, %s59
      %p73 = scmp.eq.s32.totalorder %s28, 1
      %p74 = por %p72, %p73
      %p76 = scmp.ne.s32.totalorder %s59, %s75
      %p77 = scmp.eq.s32.totalorder %s28, 0
      %p78 = por %p76, %p77
      %s79 = ssub.s32 %s29, %s48
      %s80 = ssub.s32 %s30, %s44
      %s81 = sor.u32 %s79, %s80
      %s82 = ssub.s32 %s31, %s40
      %s83 = sor.u32 %s81, %s82
      %p84 = scmp.eq.s32.totalorder %s83, 0
      %s86 = sadd.s32 %s85, 1
      %s87 = scalar_select %p84, %s85, %s86
      %p90 = pneg %p84
      %p91 = scmp.eq.s32.totalorder %s22, 1
      %p92 = por %p90, %p91
      %p93 = scmp.ne.s32.totalorder %s85, %s88
      %p94 = scmp.eq.s32.totalorder %s22, 0
      %p95 = por %p93, %p94
      %p96 = scmp.ne.s32.totalorder %s85, %s88
      %p97 = scmp.eq.s32.totalorder %s27, 1
      %p98 = por %p96, %p97
      %p99 = scmp.ne.s32.totalorder %s88, %s89
      %p100 = scmp.eq.s32.totalorder %s27, 0
      %p101 = por %p99, %p100
      %p102 = scmp.ne.s32.totalorder %s88, %s89
      %p103 = scmp.eq.s32.totalorder %s28, 1
      %p104 = por %p102, %p103
      %p106 = scmp.ne.s32.totalorder %s89, %s105
      %p107 = scmp.eq.s32.totalorder %s28, 0
      %p108 = por %p106, %p107
      %s109 = ssub.s32 %s29, %s48
      %s110 = ssub.s32 %s30, %s44
      %s111 = sor.u32 %s109, %s110
      %p112 = scmp.eq.s32.totalorder %s111, 0
      %s114 = sadd.s32 %s113, 1
      %s115 = scalar_select %p112, %s113, %s114
      %p118 = pneg %p112
      %p119 = scmp.eq.s32.totalorder %s22, 1
      %p120 = por %p118, %p119
      %p121 = scmp.ne.s32.totalorder %s113, %s116
      %p122 = scmp.eq.s32.totalorder %s22, 0
      %p123 = por %p121, %p122
      %p124 = scmp.ne.s32.totalorder %s113, %s116
      %p125 = scmp.eq.s32.totalorder %s27, 1
      %p126 = por %p124, %p125
      %p127 = scmp.ne.s32.totalorder %s116, %s117
      %p128 = scmp.eq.s32.totalorder %s27, 0
      %p129 = por %p127, %p128
      %p130 = scmp.ne.s32.totalorder %s116, %s117
      %p131 = scmp.eq.s32.totalorder %s28, 1
      %p132 = por %p130, %p131
      %p134 = scmp.ne.s32.totalorder %s117, %s133
      %p135 = scmp.eq.s32.totalorder %s28, 0
      %p136 = por %p134, %p135
      %s137 = ssub.s32 %s29, %s48
      %s138 = ssub.s32 %s30, %s44
      %s139 = sor.u32 %s137, %s138
      %p140 = scmp.eq.s32.totalorder %s139, 0
      %s142 = sadd.s32 %s141, 1
      %s143 = scalar_select %p140, %s141, %s142
      %p146 = pneg %p140
      %p147 = scmp.eq.s32.totalorder %s22, 1
      %p148 = por %p146, %p147
      %p149 = scmp.ne.s32.totalorder %s141, %s144
      %p150 = scmp.eq.s32.totalorder %s22, 0
      %p151 = por %p149, %p150
      %p152 = scmp.ne.s32.totalorder %s141, %s144
      %p153 = scmp.eq.s32.totalorder %s27, 1
      %p154 = por %p152, %p153
      %p155 = scmp.ne.s32.totalorder %s144, %s145
      %p156 = scmp.eq.s32.totalorder %s27, 0
      %p157 = por %p155, %p156
      %p158 = scmp.ne.s32.totalorder %s144, %s145
      %p159 = scmp.eq.s32.totalorder %s28, 1
      %p160 = por %p158, %p159
      %p162 = scmp.ne.s32.totalorder %s145, %s161
      %p163 = scmp.eq.s32.totalorder %s28, 0
      %p164 = por %p162, %p163
      %p165 = scmp.le.s32.totalorder 1, %s22
      %p166 = scmp.lt.s32.totalorder %s22, 3
      %p167 = pnand %p165, %p166
      %p168 = pneg %p167
      // Predicated region
      $region9: #{tpu_custom_call.1} parent=5 // pred_check
        _
      $region10: #{tpu_custom_call.1} parent=5 // pred_check_branch
        %170 = sbr.rel (%p167) target = $region12
      $region11: #{tpu_custom_call.1} parent=5 // pred_region
        %s171 = ssub.s32 %s22, 1
      $region12: #{tpu_custom_call.1} parent=5 // pred_fallthru
        _
      %p172 = scmp.lt.s32.totalorder %s22, 2
      // Predicated region
      $region13: #{tpu_custom_call.1} parent=5 // pred_check
        %p173 = pneg %p172
      $region14: #{tpu_custom_call.1} parent=5 // pred_check_branch
        %175 = sbr.rel (%p173) target = $region16
      $region15: #{tpu_custom_call.1} parent=5 // pred_region
        // Predicated region
        $region17: #{tpu_custom_call.1} parent=15 // pred_check
          %p176 = pneg %p65
        $region18: #{tpu_custom_call.1} parent=15 // pred_check_branch
          %178 = sbr.rel (%p176) target = $region20
        $region19: #{tpu_custom_call.1} parent=15 // pred_region
          %s179 = sand.u32 %s55, 1
          %s180 = scalar_lea.sflag [#allocation5], %s179
          %s181 = sand.u32 %s55, 1
          %s182 = smul.addr %s181, 32
          %s183 = scalar_lea.vmem [#allocation4], %s182
          %s184 = smul.u32 2, %s30
          %s186 = ssub.s32 512, 512
          %187 = vsyncadd %s180, %s186
          %s188 = sadd.s32 %s31, %s184
          %s189 = smul.addr %s29, 4
          %s190 = sadd.s32 %s188, %s189
          %s191 = smul.addr %s190, 128
          %s192 = scalar_lea.hbm %s0, %s191
          %s193 = sshll.u32 %s183, 4
          %s194 = int_to_ptr.vmem [resolvable:$true] %s193
          %199 = dma.hbm_to_vmem [thread:$0]  %s192, 512, %s194, %s180, 128, 128, 8
        $region20: #{tpu_custom_call.1} parent=15 // pred_fallthru
          _
        // Predicated region
        $region21: #{tpu_custom_call.1} parent=15 // pred_check
          %p200 = pneg %p95
        $region22: #{tpu_custom_call.1} parent=15 // pred_check_branch
          %202 = sbr.rel (%p200) target = $region24
        $region23: #{tpu_custom_call.1} parent=15 // pred_region
          %s203 = sand.u32 %s85, 1
          %s204 = scalar_lea.sflag [#allocation8], %s203
          %s205 = sand.u32 %s85, 1
          %s206 = smul.addr %s205, 16
          %s207 = scalar_lea.vmem [#allocation7], %s206
          %s208 = smul.u32 2, %s30
          %s210 = ssub.s32 256, 256
          %211 = vsyncadd %s204, %s210
          %s212 = sadd.s32 %s31, %s208
          %s213 = smul.addr %s29, 2
          %s214 = sadd.s32 %s212, %s213
          %s215 = smul.addr %s214, 128
          %s216 = scalar_lea.hbm %s1, %s215
          %s217 = sshll.u32 %s207, 4
          %s218 = int_to_ptr.vmem [resolvable:$true] %s217
          %223 = dma.hbm_to_vmem [thread:$0]  %s216, 256, %s218, %s204, 128, 128, 8
        $region24: #{tpu_custom_call.1} parent=15 // pred_fallthru
          _
      $region16: #{tpu_custom_call.1} parent=5 // pred_fallthru
        _
      %p224 = scmp.le.s32.totalorder 1, %s22
      %p225 = scmp.lt.s32.totalorder %s22, 3
      %p226 = pnand %p224, %p225
      %p227 = pneg %p226
      // Predicated region
      $region25: #{tpu_custom_call.1} parent=5 // pred_check
        _
      $region26: #{tpu_custom_call.1} parent=5 // pred_check_branch
        %229 = sbr.rel (%p226) target = $region28
      $region27: #{tpu_custom_call.1} parent=5 // pred_region
        %s230 = ssub.s32 %s22, 1
        %s231 = sand.u32 %s58, 1
        %s232 = scalar_lea.sflag [#allocation5], %s231
        %s233 = sand.u32 %s58, 1
        %s234 = smul.addr %s233, 32
        %s235 = scalar_lea.vmem [#allocation4], %s234
        // Predicated region
        $region29: #{tpu_custom_call.1} parent=27 // pred_check
          %p236 = pneg %p71
        $region30: #{tpu_custom_call.1} parent=27 // pred_check_branch
          %238 = sbr.rel (%p236) target = $region32
        $region31: #{tpu_custom_call.1} parent=27 // pred_region
          %239 = dma.done %s232, 512
        $region32: #{tpu_custom_call.1} parent=27 // pred_fallthru
          _
        %s240 = sand.u32 %s88, 1
        %s241 = scalar_lea.sflag [#allocation8], %s240
        %s242 = sand.u32 %s88, 1
        %s243 = smul.addr %s242, 16
        %s244 = scalar_lea.vmem [#allocation7], %s243
        // Predicated region
        $region33: #{tpu_custom_call.1} parent=27 // pred_check
          %p245 = pneg %p101
        $region34: #{tpu_custom_call.1} parent=27 // pred_check_branch
          %247 = sbr.rel (%p245) target = $region36
        $region35: #{tpu_custom_call.1} parent=27 // pred_region
          %248 = dma.done %s241, 256
        $region36: #{tpu_custom_call.1} parent=27 // pred_fallthru
          _
        %s249 = sand.u32 %s58, 1
        %s250 = scalar_lea.sflag [#allocation5], %s249
        %s251 = sand.u32 %s58, 1
        %s252 = smul.addr %s251, 32
        %s253 = scalar_lea.vmem [#allocation4], %s252
        %p254 = pneg %p71
        %p255 = pneg %p68
        %s256 = sand.u32 %s88, 1
        %s257 = scalar_lea.sflag [#allocation8], %s256
        %s258 = sand.u32 %s88, 1
        %s259 = smul.addr %s258, 16
        %s260 = scalar_lea.vmem [#allocation7], %s259
        %p261 = pneg %p101
        %p262 = pneg %p98
        %p263 = pneg %p129
        %p264 = pneg %p126
        %s265 = sand.u32 %s116, 1
        %s266 = scalar_lea.sflag [#allocation6], %s265
        %s267 = sand.u32 %s116, 1
        %s268 = smul.addr %s267, 8
        %s269 = scalar_lea.vmem [#allocation9], %s268
        %p270 = pneg %p157
        %p271 = pneg %p154
        %s272 = sand.u32 %s144, 1
        %s273 = scalar_lea.sflag [#allocation11], %s272
        %s274 = sand.u32 %s144, 1
        %s275 = smul.addr %s274, 8
        %s276 = scalar_lea.vmem [#allocation10], %s275
        %s277 = smul.u32 2, %s33
        %s278 = smul.u32 2, %s33
        %p279 = scmp.eq.s32.totalorder %s34, 0
        // Predicated region
        $region37: #{tpu_custom_call.1} parent=27 // pred_check
          %p280 = pneg %p279
        $region38: #{tpu_custom_call.1} parent=27 // pred_check_branch
          %282 = sbr.rel (%p280) target = $region40
        $region39: #{tpu_custom_call.1} parent=27 // pred_region
          %vm283 = vcmask 130048
          %284 = vst.msk [vmem:[#allocation2] sm:$0xff] %vm283, 0.0
          %285 = vst.msk [vmem:[#allocation2 + $0x8] sm:$0xff] %vm283, 0.0
          %286 = vst.msk [vmem:[#allocation3] sm:$0xff] %vm283, 0.0
          %287 = vst.msk [vmem:[#allocation3 + $0x8] sm:$0xff] %vm283, 0.0
        $region40: #{tpu_custom_call.1} parent=27 // pred_fallthru
          _
        %v288 = vld [vmem:[%s235] sm:$0xff]
        %v289 = vld [vmem:[%s235 + $0x8] sm:$0xff]
        %s290 = scalar_lea.vmem %s235, 16 [#allocation4]
        %v291 = vld [vmem:[%s290] sm:$0xff]
        %v292 = vld [vmem:[%s290 + $0x8] sm:$0xff]
        %v293 = vld [vmem:[%s244] sm:$0xff]
        %v294 = vld [vmem:[%s244 + $0x8] sm:$0xff]
        %vm295 = vcmp.eq.s32.totalorder %v293, 1
        %vm296 = vcmp.eq.s32.totalorder %v294, 1
        %v297 = vsub.f32 %v288, %v291
        %v298 = vsub.f32 %v289, %v292
        %v299 = vsub.f32 %v291, %v288
        %v300 = vsub.f32 %v292, %v289
        %v301 = vsel %vm295, %v297, %v299
        %v302 = vsel %vm296, %v298, %v300
        %v303 = vmax.f32 %v301, 0.0
        %v304 = vmax.f32 %v302, 0.0
        %v305 = vand.u32 2147483647, %v301
        %v306 = vand.u32 2147483647, %v302
        %v307 = vsub.f32 0.0, %v305
        %v308 = vsub.f32 0.0, %v306
        %v309 = vmul.f32 %v307, 1.442695
        %v310 = vpow.pop %v309
        %v311 = vmul.f32 %v308, 1.442695
        %v312 = vpow.pop %v311
        %v313 = vadd.f32 %v310, 1.0
        %v314 = vlog2.pop %v313
        %v315 = vmul.f32 %v314, 0.6931472
        %v316 = vmul.f32 -0.5, %v310
        %v317 = vadd.f32 %v316, 1.0
        %v318 = vmul.f32 %v317, %v310
        %v319 = vand.u32 2147483647, %v310
        %vm320 = vcmp.lt.f32.partialorder %v319, 0.0004427343
        %v321 = vsel %vm320, %v318, %v315
        %v322 = vadd.f32 %v312, 1.0
        %v323 = vlog2.pop %v322
        %v324 = vmul.f32 %v323, 0.6931472
        %v325 = vmul.f32 -0.5, %v312
        %v326 = vadd.f32 %v325, 1.0
        %v327 = vmul.f32 %v326, %v312
        %v328 = vand.u32 2147483647, %v312
        %vm329 = vcmp.lt.f32.partialorder %v328, 0.0004427343
        %v330 = vsel %vm329, %v327, %v324
        %v331 = vadd.f32 %v303, %v321
        %v332 = vadd.f32 %v304, %v330
        %v333 = vsel %vm295, 32.9, 0.51
        %v334 = vsel %vm296, 32.9, 0.51
        %vm335 = vcmp.ne.s32.totalorder %v293, 255
        %vm336 = vcmp.ne.s32.totalorder %v294, 255
        %v337 = vld [vmem:[#allocation2] sm:$0xff]
        %v338 = vld [vmem:[#allocation2 + $0x8] sm:$0xff]
        %v339 = vmul.f32 %v333, %v331
        %v340 = vmul.f32 %v334, %v332
        %v341 = vsel %vm335, %v339, 0.0
        %v342 = vsel %vm336, %v340, 0.0
        %v343 = vadd.f32 %v337, %v341
        %v344 = vadd.f32 %v338, %v342
        %vm345 = vcmask 130048
        %346 = vst.msk [vmem:[#allocation2] sm:$0xff] %vm345, %v343
        %347 = vst.msk [vmem:[#allocation2 + $0x8] sm:$0xff] %vm345, %v344
        %v348 = vld [vmem:[#allocation3] sm:$0xff]
        %v349 = vld [vmem:[#allocation3 + $0x8] sm:$0xff]
        %v350 = vsel %vm335, %v333, 0.0
        %v351 = vsel %vm336, %v334, 0.0
        %v352 = vadd.f32 %v348, %v350
        %v353 = vadd.f32 %v349, %v351
        %354 = vst.msk [vmem:[#allocation3] sm:$0xff] %vm345, %v352
        %355 = vst.msk [vmem:[#allocation3 + $0x8] sm:$0xff] %vm345, %v353
        // Predicated region
        $region41: #{tpu_custom_call.1} parent=27 // pred_check
          %p356 = pneg %p279
        $region42: #{tpu_custom_call.1} parent=27 // pred_check_branch
          %358 = sbr.rel (%p356) target = $region44
        $region43: #{tpu_custom_call.1} parent=27 // pred_region
          %v359 = vld [vmem:[#allocation2] sm:$0xff]
          %v360 = vld [vmem:[#allocation2 + $0x8] sm:$0xff]
          %v361 = vsel %vm345, %v359, 0.0
          %v362 = vsel %vm345, %v360, 0.0
          %v363 = vadd.f32 %v361, %v362
          %364 = vadd.xlane.f32.xlu0 %v363
          %v365 = vpop.xlane.xlu0 %364
          %v366 = vrot.slane %v365, 4
          %v367 = vadd.f32 %v365, %v366
          %v368 = vrot.slane %v367, 2
          %v369 = vadd.f32 %v367, %v368
          %v370 = vrot.slane %v369, 1
          %v371 = vadd.f32 %v369, %v370
          %s372 = vtos %v371
          %v373 = vstv %s372
          %374 = vst [vmem:[%s269] sm:$0xff] %v373
          %v375 = vld [vmem:[#allocation3] sm:$0xff]
          %v376 = vld [vmem:[#allocation3 + $0x8] sm:$0xff]
          %v377 = vsel %vm345, %v375, 0.0
          %v378 = vsel %vm345, %v376, 0.0
          %v379 = vadd.f32 %v377, %v378
          %380 = vadd.xlane.f32.xlu0 %v379
          %v381 = vpop.xlane.xlu0 %380
          %v382 = vrot.slane %v381, 4
          %v383 = vadd.f32 %v381, %v382
          %v384 = vrot.slane %v383, 2
          %v385 = vadd.f32 %v383, %v384
          %v386 = vrot.slane %v385, 1
          %v387 = vadd.f32 %v385, %v386
          %s388 = vtos %v387
          %v389 = vstv %s388
          %390 = vst [vmem:[%s276] sm:$0xff] %v389
        $region44: #{tpu_custom_call.1} parent=27 // pred_fallthru
          _
        %s391 = sand.u32 %s116, 1
        %s392 = scalar_lea.sflag [#allocation6], %s391
        %s393 = sand.u32 %s116, 1
        %s394 = smul.addr %s393, 8
        %s395 = scalar_lea.vmem [#allocation9], %s394
        %s396 = sand.u32 %s144, 1
        %s397 = scalar_lea.sflag [#allocation11], %s396
        %s398 = sand.u32 %s144, 1
        %s399 = smul.addr %s398, 8
        %s400 = scalar_lea.vmem [#allocation10], %s399
        // Predicated region
        $region45: #{tpu_custom_call.1} parent=27 // pred_check
          %p401 = pneg %p126
        $region46: #{tpu_custom_call.1} parent=27 // pred_check_branch
          %403 = sbr.rel (%p401) target = $region48
        $region47: #{tpu_custom_call.1} parent=27 // pred_region
          %s405 = ssub.s32 128, 128
          %406 = vsyncadd %s392, %s405
          %s407 = sadd.s32 %s33, %s32
          %s408 = smul.addr %s407, 128
          %s409 = scalar_lea.hbm %s2, %s408
          %s411 = sshll.u32 %s395, 4
          %s412 = int_to_ptr.vmem [resolvable:$true] %s411
          %414 = dma.vmem_to_hbm [thread:$0]  %s412, 128, %s409, %s392
        $region48: #{tpu_custom_call.1} parent=27 // pred_fallthru
          _
        // Predicated region
        $region49: #{tpu_custom_call.1} parent=27 // pred_check
          %p415 = pneg %p154
        $region50: #{tpu_custom_call.1} parent=27 // pred_check_branch
          %417 = sbr.rel (%p415) target = $region52
        $region51: #{tpu_custom_call.1} parent=27 // pred_region
          %s419 = ssub.s32 128, 128
          %420 = vsyncadd %s397, %s419
          %s421 = sadd.s32 %s33, %s32
          %s422 = smul.addr %s421, 128
          %s423 = scalar_lea.hbm %s3, %s422
          %s425 = sshll.u32 %s400, 4
          %s426 = int_to_ptr.vmem [resolvable:$true] %s425
          %428 = dma.vmem_to_hbm [thread:$0]  %s426, 128, %s423, %s397
        $region52: #{tpu_custom_call.1} parent=27 // pred_fallthru
          _
      $region28: #{tpu_custom_call.1} parent=5 // pred_fallthru
        _
      %p429 = scmp.le.s32.totalorder 2, %s22
      // Predicated region
      $region53: #{tpu_custom_call.1} parent=5 // pred_check
        %p430 = pneg %p429
      $region54: #{tpu_custom_call.1} parent=5 // pred_check_branch
        %432 = sbr.rel (%p430) target = $region56
      $region55: #{tpu_custom_call.1} parent=5 // pred_region
        %s433 = ssub.s32 %s22, 2
        // Predicated region
        $region57: #{tpu_custom_call.1} parent=55 // pred_check
          %p434 = pneg %p132
        $region58: #{tpu_custom_call.1} parent=55 // pred_check_branch
          %436 = sbr.rel (%p434) target = $region60
        $region59: #{tpu_custom_call.1} parent=55 // pred_region
          %s437 = sand.u32 %s117, 1
          %s438 = scalar_lea.sflag [#allocation6], %s437
          %s439 = sand.u32 %s117, 1
          %s440 = smul.addr %s439, 8
          %s441 = scalar_lea.vmem [#allocation9], %s440
          %442 = dma.done %s438, 128
        $region60: #{tpu_custom_call.1} parent=55 // pred_fallthru
          _
        // Predicated region
        $region61: #{tpu_custom_call.1} parent=55 // pred_check
          %p443 = pneg %p160
        $region62: #{tpu_custom_call.1} parent=55 // pred_check_branch
          %445 = sbr.rel (%p443) target = $region64
        $region63: #{tpu_custom_call.1} parent=55 // pred_region
          %s446 = sand.u32 %s145, 1
          %s447 = scalar_lea.sflag [#allocation11], %s446
          %s448 = sand.u32 %s145, 1
          %s449 = smul.addr %s448, 8
          %s450 = scalar_lea.vmem [#allocation10], %s449
          %451 = dma.done %s447, 128
        $region64: #{tpu_custom_call.1} parent=55 // pred_fallthru
          _
      $region56: #{tpu_custom_call.1} parent=5 // pred_fallthru
        _
    $region6: #{tpu_custom_call.1} parent=1 // loop_footer
      %s26 = sadd.s32 1, %s22
    $region7: #{tpu_custom_call.1} parent=1 // loop_footer_branch
      %21 = sbr.rel target = $region3
    $region8: #{tpu_custom_call.1} parent=1 // loop_exit
      _
    %452 = vsyncpa [#allocation5], 1
    %s453 = scalar_lea.sflag [#allocation5], 1
    %454 = vsyncpa %s453, 1
    %455 = vsyncpa [#allocation8], 1
    %s456 = scalar_lea.sflag [#allocation8], 1
    %457 = vsyncpa %s456, 1
    %458 = vsyncpa [#allocation6], 1
    %s459 = scalar_lea.sflag [#allocation6], 1
    %460 = vsyncpa %s459, 1
    %461 = vsyncpa [#allocation11], 1
    %s462 = scalar_lea.sflag [#allocation11], 1
    %463 = vsyncpa %s462, 1

</llo_original>
